<compile_context>
chip_gen: v7x
topology: tpu7x:2x2x1
jax: 0.10.0
libtpu: 0.0.40
codegen_flags: <defaults>
</compile_context>

<pallas_src>
import jax
import jax.numpy as jnp
from jax.experimental import pallas as pl
from jax.experimental.pallas import tpu as pltpu


# ----------------------------------------------------------------------------
# Kernel body:   out = img * scale + bias      (per-row scale/bias, f32 math)
# ----------------------------------------------------------------------------
def _normalize_kernel(img_ref, scale_ref, bias_ref, out_ref):
    x = img_ref[...].astype(jnp.float32)
    out_ref[...] = (x * scale_ref[...] + bias_ref[...]).astype(out_ref.dtype)


# ----------------------------------------------------------------------------
# Host-side helpers (all static-shape Python, evaluated at trace time)
# ----------------------------------------------------------------------------
def _round_up(x, m):
    return -(-x // m) * m


def _round_down(x, m):
    return (x // m) * m


def _sublane_align(itemsize):
    # Native sublane packing: 8 rows for 4-byte, 16 for 2-byte, 32 for 1-byte.
    return max(8, 32 // max(itemsize, 1))


def _per_buffer_budget_bytes():
    """~4 MiB/buffer on v6e/v7x/v5p (fast HBM), 2 MiB on v5e / older / unknown."""
    budget = 2 * 1024 * 1024
    try:
        kind = jax.devices()[0].device_kind.lower()
        old = any(t in kind for t in ("v2", "v3", "v4", "v5 lite", "v5lite", "v5e"))
        if not old:
            budget = 4 * 1024 * 1024
    except Exception:
        pass
    return budget


def _choose_view(N, C, H, W, align_r):
    """Pick a free (reshape-only) 2-D view: (rows, cols, rows_per_channel).

    Rows map to sublanes, cols to lanes.  Prefers cols % 128 == 0 and
    rows % align_r == 0 (full vreg occupancy, unmasked stores); otherwise
    returns the raw (N*C, H*W) view and ragged blocks handle the rest.
    """
    R0, L0 = N * C, H * W
    if R0 % align_r == 0 and L0 % 128 == 0:
        return R0, L0, 1
    # Fold spatial into the sublane axis: (N*C*k, H*W//k) is a free reshape of
    # contiguous NCHW data for any k dividing H*W.
    max_k = min(L0 // 128 if L0 >= 128 else 1, 1024)
    for k in range(1, max_k + 1):
        if L0 % (k * 128):
            continue
        if (R0 * k) % align_r:
            continue
        return R0 * k, L0 // k, k
    return R0, L0, 1


def _pick_extent(total, align, cap):
    """Tile size along one axis: a multiple of `align`, or the full extent."""
    if total <= align:
        return total                               # full-extent block is legal
    cap = _round_down(max(cap, align), align)
    cap = min(cap, _round_up(total, align))
    if total % align == 0 and total <= cap:
        return total
    best_div = 0
    if total % align == 0:
        d = align
        while d <= cap:
            if total % d == 0:
                best_div = d
            d += align
    if best_div and best_div * 4 >= cap:
        return best_div                            # even split, near the cap
    return cap                                     # ragged tail (Pallas masks it)


def _pick_tiles(R, L, itemsize, align_r, budget_bytes):
    """Lane axis first (big contiguous DMAs / full-width vst), then sublanes."""
    budget_elems = max(budget_bytes // max(itemsize, 1), align_r * 128)
    rows_floor = min(max(R, 1), align_r)           # rows any tile will carry
    tile_l = _pick_extent(L, 128, max(budget_elems // rows_floor, 128))
    tile_r = _pick_extent(R, align_r, max(budget_elems // tile_l, align_r))
    return tile_r, tile_l


# ----------------------------------------------------------------------------
# Public wrapper
# ----------------------------------------------------------------------------
def normalization_forward(img, mean, std, *, donate_img=False,
                          min_pallas_bytes=128 * 1024):
    """out = (img - mean[:, None, None]) / std[:, None, None] for NCHW img.

    Set donate_img=True only when the caller donates `img` at the jit
    boundary; then the output aliases the input buffer (halves HBM footprint).
    """
    if not jnp.issubdtype(img.dtype, jnp.floating):
        # The torch reference promotes integer images to float on divide.
        img = img.astype(jnp.float32)

    N, C, H, W = img.shape
    mean = jnp.asarray(mean, dtype=jnp.float32).reshape(-1)
    std = jnp.asarray(std, dtype=jnp.float32).reshape(-1)
    assert mean.shape == (C,) and std.shape == (C,)

    itemsize = jnp.dtype(img.dtype).itemsize
    total_bytes = N * C * H * W * itemsize

    # Tiny inputs: launch + single grid step dominates; let XLA fuse instead.
    if total_bytes < min_pallas_bytes:
        out = (img.astype(jnp.float32) - mean.reshape(-1, 1, 1)) / std.reshape(-1, 1, 1)
        return out.astype(img.dtype)

    align_r = _sublane_align(itemsize)
    R, L, rep = _choose_view(N, C, H, W, align_r)

    # Fold (x - m) / s into a per-row FMA:  x * (1/s) + (-m/s).
    inv_std = 1.0 / std
    scale = jnp.repeat(jnp.tile(inv_std, N), rep).reshape(R, 1)          # (R,1) f32
    bias = jnp.repeat(jnp.tile(-mean * inv_std, N), rep).reshape(R, 1)   # (R,1) f32

    x2d = img.reshape(R, L)                        # free: NCHW is contiguous

    budget = _per_buffer_budget_bytes()
    tile_r, tile_l = _pick_tiles(R, L, itemsize, align_r, budget)

    # Guarantee >= 2 grid steps along a "parallel" axis so both v7x
    # TensorCores get work (harmless elsewhere: one extra cheap step).
    while pl.cdiv(R, tile_r) * pl.cdiv(L, tile_l) < 2:
        if tile_l % 128 == 0 and tile_l >= 256:
            tile_l = max(128, _round_down(tile_l // 2, 128))
        elif tile_r % align_r == 0 and tile_r >= 2 * align_r:
            tile_r = max(align_r, _round_down(tile_r // 2, align_r))
        else:
            break

    grid = (pl.cdiv(R, tile_r), pl.cdiv(L, tile_l))

    # Raise the scoped-VMEM limit only when using the bigger (4 MiB) buffers;
    # 4 buffers x 4 MiB = 16 MiB fits comfortably under 32 MiB on v6e/v7x.
    vmem_limit = 32 * 1024 * 1024 if budget > 2 * 1024 * 1024 else None

    cost = pl.CostEstimate(
        flops=2 * R * L,
        bytes_accessed=2 * R * L * itemsize + 2 * R * 4,
        transcendentals=0,
    )

    # TODO(synk): if xprof shows exposed DMA at step boundaries, try
    # pipeline_mode=pl.Buffered(3) on the image BlockSpec (verify first).
    out2d = pl.pallas_call(
        _normalize_kernel,
        out_shape=jax.ShapeDtypeStruct((R, L), img.dtype),
        grid=grid,
        in_specs=[
            pl.BlockSpec((tile_r, tile_l), lambda r, l: (r, l)),
            pl.BlockSpec((tile_r, 1), lambda r, l: (r, 0)),
            pl.BlockSpec((tile_r, 1), lambda r, l: (r, 0)),
        ],
        out_specs=pl.BlockSpec((tile_r, tile_l), lambda r, l: (r, l)),
        compiler_params=pltpu.CompilerParams(
            dimension_semantics=("parallel", "parallel"),
            vmem_limit_bytes=vmem_limit,
        ),
        cost_estimate=cost,
        input_output_aliases={0: 0} if donate_img else {},
    )(x2d, scale, bias)

    return out2d.reshape(N, C, H, W)


if __name__ == "__main__":
    key = jax.random.PRNGKey(0)

    # ImageNet RGB normalization constants used by neural_style_transfer.py.
    mean = jnp.array([0.485, 0.456, 0.406], dtype=jnp.float32)
    std = jnp.array([0.229, 0.224, 0.225], dtype=jnp.float32)

    def ref(x):
        return (x - mean.reshape(-1, 1, 1)) / std.reshape(-1, 1, 1)

    k1, k2 = jax.random.split(key)

    # 1) Large enough to take the Pallas path (2*3*128*128*4 B = 384 KiB).
    img = jax.random.uniform(k1, (2, 3, 128, 128), dtype=jnp.float32)
    out = jax.block_until_ready(normalization_forward(img, mean, std))
    assert out.shape == img.shape
    assert jnp.allclose(out, ref(img), rtol=1e-5, atol=1e-5)

    # 2) Tiny input exercises the fused-XLA fallback path.
    img_small = jax.random.uniform(k2, (2, 3, 16, 16), dtype=jnp.float32)
    out_small = jax.block_until_ready(normalization_forward(img_small, mean, std))
    assert jnp.allclose(out_small, ref(img_small), rtol=1e-5, atol=1e-5)

    print("KERNEL_OK")
</pallas_src>

<mosaic_0001>
module attributes {stable_mosaic.version = 11 : i64} {
  func.func @_normalize_kernel(%arg0: i32, %arg1: i32, %arg2: memref<24x2048xf32, #tpu.memory_space<vmem>>, %arg3: memref<24x1xf32, #tpu.memory_space<vmem>>, %arg4: memref<24x1xf32, #tpu.memory_space<vmem>>, %arg5: memref<24x2048xf32, #tpu.memory_space<vmem>>) attributes {dimension_semantics = [#tpu.dimension_semantics<parallel>, #tpu.dimension_semantics<parallel>], iteration_bounds = array<i64: 1, 2>, scalar_prefetch = 0 : i64, scratch_operands = 0 : i64, tpu.core_type = #tpu.core_type<tc>, window_params = [{transform_indices = @transform_0, window_bounds = array<i64: 24, 2048>}, {transform_indices = @transform_1, window_bounds = array<i64: 24, 1>}, {transform_indices = @transform_2, window_bounds = array<i64: 24, 1>}, {transform_indices = @transform_3, window_bounds = array<i64: 24, 2048>}]} {
    %c0 = arith.constant 0 : index
    %c0_0 = arith.constant 0 : index
    %0 = vector.load %arg2[%c0, %c0_0] : memref<24x2048xf32, #tpu.memory_space<vmem>>, vector<24x2048xf32>
    %c0_1 = arith.constant 0 : index
    %c0_2 = arith.constant 0 : index
    %1 = vector.load %arg3[%c0_1, %c0_2] : memref<24x1xf32, #tpu.memory_space<vmem>>, vector<24x1xf32>
    %2 = vector.broadcast %1 : vector<24x1xf32> to vector<24x2048xf32>
    %3 = arith.mulf %0, %2 : vector<24x2048xf32>
    %c0_3 = arith.constant 0 : index
    %c0_4 = arith.constant 0 : index
    %4 = vector.load %arg4[%c0_3, %c0_4] : memref<24x1xf32, #tpu.memory_space<vmem>>, vector<24x1xf32>
    %5 = vector.broadcast %4 : vector<24x1xf32> to vector<24x2048xf32>
    %6 = arith.addf %3, %5 : vector<24x2048xf32>
    %c0_5 = arith.constant 0 : index
    %c0_6 = arith.constant 0 : index
    %7 = vector.load %arg5[%c0_5, %c0_6] : memref<24x2048xf32, #tpu.memory_space<vmem>>, vector<24x2048xf32>
    tpu.vector_store %arg5[%c0_5, %c0_6], %6 {strides = array<i32>} : memref<24x2048xf32, #tpu.memory_space<vmem>>, vector<24x2048xf32>,
    return
  }
  func.func @transform_0(%arg0: i32, %arg1: i32) -> (i32, i32) {
    %c0_i32 = arith.constant 0 : i32
    return %arg0, %arg1 : i32, i32
  }
  func.func @transform_1(%arg0: i32, %arg1: i32) -> (i32, i32) {
    %c0_i32 = arith.constant 0 : i32
    %c0_i32_0 = arith.constant 0 : i32
    return %arg0, %c0_i32 : i32, i32
  }
  func.func @transform_2(%arg0: i32, %arg1: i32) -> (i32, i32) {
    %c0_i32 = arith.constant 0 : i32
    %c0_i32_0 = arith.constant 0 : i32
    return %arg0, %c0_i32 : i32, i32
  }
  func.func @transform_3(%arg0: i32, %arg1: i32) -> (i32, i32) {
    %c0_i32 = arith.constant 0 : i32
    return %arg0, %arg1 : i32, i32
  }
}

</mosaic_0001>

<llo_original>
// kernel: tpu_custom_call.1
$region0: #{tpu_custom_call.1}
  #allocation0 [shape = 'u32[]', space=smem, size = 0x4, offset = 0x4, fixed_abs, tag = 'smem constant byte address 0x4 - core index']
  #allocation1 [shape = 'u32[144,128]{1,0:T(1,128)}', space=vmem, size = 0x12000, scoped, tag = 'internal scratch']
  %s0 = inlined_call_operand.hbm [shape: f32[24,4096], index: 0, kind: input, shape index: {}]
  %s1 = inlined_call_operand.vmem [shape: f32[24,1], index: 1, kind: input, shape index: {}]
  %s2 = inlined_call_operand.vmem [shape: f32[24,1], index: 2, kind: input, shape index: {}]
  %s3 = inlined_call_operand.hbm [shape: f32[24,4096], index: 3, kind: output, shape index: {}]
  %s4 = sld [smem:[#allocation0]]
  $region49: #{tpu_custom_call.1} parent=0
    _
  %s6 = ssub.s32 1, %s4
  %s7 = scalar_select 0, %s6, %s4
  $region1: #{tpu_custom_call.1} parent=0
    #allocation2 [shape = 'u8[393216]{0}', space=vmem, size = 0x60000, scoped, tag = 'input window, operand 0']
    #allocation3 [shape = 's32[2]{0}', space=sflag, size = 0x8, scoped, tag = 'scoped memory for tpu_custom_call.1']
    #allocation4 [shape = 's32[2]{0}', space=sflag, size = 0x8, scoped, tag = 'scoped memory for tpu_custom_call.1']
    #allocation5 [shape = 'u8[393216]{0}', space=vmem, size = 0x60000, scoped, tag = 'output window, operand 0']
    %8 = vsyncpa [#allocation3], 0
    %s9 = scalar_lea.sflag [#allocation3], 1
    %10 = vsyncpa %s9, 0
    %11 = vsyncpa [#allocation4], 0
    %s12 = scalar_lea.sflag [#allocation4], 1
    %13 = vsyncpa %s12, 0
    loop: start=0, step=1, limit=4
    $region2: #{tpu_custom_call.1} parent=1 // loop_pre_header
      _
    $region3: #{tpu_custom_call.1} parent=1 // loop_header
      %s15 = sphi 0, %s19
      %p16 = scmp.ge.s32.totalorder %s15, 4
      %s22 = sphi 0, %s34
      %s23 = sphi 0, %s30
      %s24 = sphi 0, %s22
      %s25 = sphi 0, %s23
      %s26 = sphi 0, %s24
      %s27 = sphi 0, %s25
      %s39 = sphi 0, %s41
      %s42 = sphi 0, %s39
      %s43 = sphi 0, %s42
      %s59 = sphi 0, %s43
      %s65 = sphi 0, %s67
      %s68 = sphi 0, %s65
      %s69 = sphi 0, %s68
      %s85 = sphi 0, %s69
      %s91 = sphi 0, %s93
      %s94 = sphi 0, %s91
      %s95 = sphi 0, %s94
      %s111 = sphi 0, %s95
      %s119 = sphi 0, %s121
      %s122 = sphi 0, %s119
      %s123 = sphi 0, %s122
      %s139 = sphi 0, %s123
    $region4: #{tpu_custom_call.1} parent=1 // loop_header_branch
      %18 = sbr.rel (%p16) target = $region8
    $region5: #{tpu_custom_call.1} parent=1 // loop_body
      %s20 = ssub.s32 %s15, 1
      %s21 = ssub.s32 %s15, 2
      %s28 = sadd.s32 1, %s23
      %p29 = scmp.ge.s32.totalorder %s28, 2
      %s30 = scalar_select %p29, 0, %s28
      %s31 = sadd.s32 1, %s22
      %s32 = scalar_select %p29, %s31, %s22
      %p33 = scmp.ge.s32.totalorder %s32, 1
      %s34 = scalar_select %p33, 0, %s32
      %s35 = ssub.s32 %s22, %s34
      %s36 = ssub.s32 %s23, %s30
      %s37 = sor.u32 %s35, %s36
      %p38 = scmp.eq.s32.totalorder %s37, 0
      %s40 = sadd.s32 %s39, 1
      %s41 = scalar_select %p38, %s39, %s40
      %p44 = pneg %p38
      %p45 = scmp.eq.s32.totalorder %s15, 1
      %p46 = por %p44, %p45
      %p47 = scmp.ne.s32.totalorder %s39, %s42
      %p48 = scmp.eq.s32.totalorder %s15, 0
      %p49 = por %p47, %p48
      %p50 = scmp.ne.s32.totalorder %s39, %s42
      %p51 = scmp.eq.s32.totalorder %s20, 1
      %p52 = por %p50, %p51
      %p53 = scmp.ne.s32.totalorder %s42, %s43
      %p54 = scmp.eq.s32.totalorder %s20, 0
      %p55 = por %p53, %p54
      %p56 = scmp.ne.s32.totalorder %s42, %s43
      %p57 = scmp.eq.s32.totalorder %s21, 1
      %p58 = por %p56, %p57
      %p60 = scmp.ne.s32.totalorder %s43, %s59
      %p61 = scmp.eq.s32.totalorder %s21, 0
      %p62 = por %p60, %p61
      %s63 = ssub.s32 %s22, %s34
      %p64 = scmp.eq.s32.totalorder %s63, 0
      %s66 = sadd.s32 %s65, 1
      %s67 = scalar_select %p64, %s65, %s66
      %p70 = pneg %p64
      %p71 = scmp.eq.s32.totalorder %s15, 1
      %p72 = por %p70, %p71
      %p73 = scmp.ne.s32.totalorder %s65, %s68
      %p74 = scmp.eq.s32.totalorder %s15, 0
      %p75 = por %p73, %p74
      %p76 = scmp.ne.s32.totalorder %s65, %s68
      %p77 = scmp.eq.s32.totalorder %s20, 1
      %p78 = por %p76, %p77
      %p79 = scmp.ne.s32.totalorder %s68, %s69
      %p80 = scmp.eq.s32.totalorder %s20, 0
      %p81 = por %p79, %p80
      %p82 = scmp.ne.s32.totalorder %s68, %s69
      %p83 = scmp.eq.s32.totalorder %s21, 1
      %p84 = por %p82, %p83
      %p86 = scmp.ne.s32.totalorder %s69, %s85
      %p87 = scmp.eq.s32.totalorder %s21, 0
      %p88 = por %p86, %p87
      %s89 = ssub.s32 %s22, %s34
      %p90 = scmp.eq.s32.totalorder %s89, 0
      %s92 = sadd.s32 %s91, 1
      %s93 = scalar_select %p90, %s91, %s92
      %p96 = pneg %p90
      %p97 = scmp.eq.s32.totalorder %s15, 1
      %p98 = por %p96, %p97
      %p99 = scmp.ne.s32.totalorder %s91, %s94
      %p100 = scmp.eq.s32.totalorder %s15, 0
      %p101 = por %p99, %p100
      %p102 = scmp.ne.s32.totalorder %s91, %s94
      %p103 = scmp.eq.s32.totalorder %s20, 1
      %p104 = por %p102, %p103
      %p105 = scmp.ne.s32.totalorder %s94, %s95
      %p106 = scmp.eq.s32.totalorder %s20, 0
      %p107 = por %p105, %p106
      %p108 = scmp.ne.s32.totalorder %s94, %s95
      %p109 = scmp.eq.s32.totalorder %s21, 1
      %p110 = por %p108, %p109
      %p112 = scmp.ne.s32.totalorder %s95, %s111
      %p113 = scmp.eq.s32.totalorder %s21, 0
      %p114 = por %p112, %p113
      %s115 = ssub.s32 %s22, %s34
      %s116 = ssub.s32 %s23, %s30
      %s117 = sor.u32 %s115, %s116
      %p118 = scmp.eq.s32.totalorder %s117, 0
      %s120 = sadd.s32 %s119, 1
      %s121 = scalar_select %p118, %s119, %s120
      %p124 = pneg %p118
      %p125 = scmp.eq.s32.totalorder %s15, 1
      %p126 = por %p124, %p125
      %p127 = scmp.ne.s32.totalorder %s119, %s122
      %p128 = scmp.eq.s32.totalorder %s15, 0
      %p129 = por %p127, %p128
      %p130 = scmp.ne.s32.totalorder %s119, %s122
      %p131 = scmp.eq.s32.totalorder %s20, 1
      %p132 = por %p130, %p131
      %p133 = scmp.ne.s32.totalorder %s122, %s123
      %p134 = scmp.eq.s32.totalorder %s20, 0
      %p135 = por %p133, %p134
      %p136 = scmp.ne.s32.totalorder %s122, %s123
      %p137 = scmp.eq.s32.totalorder %s21, 1
      %p138 = por %p136, %p137
      %p140 = scmp.ne.s32.totalorder %s123, %s139
      %p141 = scmp.eq.s32.totalorder %s21, 0
      %p142 = por %p140, %p141
      %p143 = scmp.le.s32.totalorder 1, %s15
      %p144 = scmp.lt.s32.totalorder %s15, 3
      %p145 = pnand %p143, %p144
      %p146 = pneg %p145
      // Predicated region
      $region9: #{tpu_custom_call.1} parent=5 // pred_check
        _
      $region10: #{tpu_custom_call.1} parent=5 // pred_check_branch
        %148 = sbr.rel (%p145) target = $region12
      $region11: #{tpu_custom_call.1} parent=5 // pred_region
        %s149 = ssub.s32 %s15, 1
        // Predicated region
        $region13: #{tpu_custom_call.1} parent=11 // pred_check
          %p150 = pneg %p81
        $region14: #{tpu_custom_call.1} parent=11 // pred_check_branch
          %152 = sbr.rel (%p150) target = $region16
        $region15: #{tpu_custom_call.1} parent=11 // pred_region
          %s153 = smul.u32 3, %s24
          %p154 = scmp.lt.s32.totalorder %s153, 2
          %s155 = scalar_select %p154, %s153, 2
          %s156 = smul.addr %s155, 8
          %s157 = scalar_lea.vmem %s1, %s156
          %s158 = smul.u32 3, %s24
        $region16: #{tpu_custom_call.1} parent=11 // pred_fallthru
          _
        // Predicated region
        $region17: #{tpu_custom_call.1} parent=11 // pred_check
          %p159 = pneg %p107
        $region18: #{tpu_custom_call.1} parent=11 // pred_check_branch
          %161 = sbr.rel (%p159) target = $region20
        $region19: #{tpu_custom_call.1} parent=11 // pred_region
          %s162 = smul.u32 3, %s24
          %p163 = scmp.lt.s32.totalorder %s162, 2
          %s164 = scalar_select %p163, %s162, 2
          %s165 = smul.addr %s164, 8
          %s166 = scalar_lea.vmem %s2, %s165
          %s167 = smul.u32 3, %s24
        $region20: #{tpu_custom_call.1} parent=11 // pred_fallthru
          _
      $region12: #{tpu_custom_call.1} parent=5 // pred_fallthru
        _
      %p168 = scmp.lt.s32.totalorder %s15, 2
      // Predicated region
      $region21: #{tpu_custom_call.1} parent=5 // pred_check
        %p169 = pneg %p168
      $region22: #{tpu_custom_call.1} parent=5 // pred_check_branch
        %171 = sbr.rel (%p169) target = $region24
      $region23: #{tpu_custom_call.1} parent=5 // pred_region
        // Predicated region
        $region25: #{tpu_custom_call.1} parent=23 // pred_check
          %p172 = pneg %p49
        $region26: #{tpu_custom_call.1} parent=23 // pred_check_branch
          %174 = sbr.rel (%p172) target = $region28
        $region27: #{tpu_custom_call.1} parent=23 // pred_region
          %s175 = sand.u32 %s39, 1
          %s176 = scalar_lea.sflag [#allocation3], %s175
          %s177 = sand.u32 %s39, 1
          %s178 = smul.addr %s177, 384
          %s179 = scalar_lea.vmem [#allocation2], %s178
          %s180 = smul.u32 3, %s22
          %s181 = smul.u32 16, %s23
          %s183 = ssub.s32 6144, 6144
          %184 = vsyncadd %s176, %s183
          %s185 = smul.addr %s180, 32
          %s186 = sadd.s32 %s181, %s185
          %s187 = smul.addr %s186, 128
          %s188 = scalar_lea.hbm %s0, %s187
          %s189 = sshll.u32 %s179, 4
          %s190 = int_to_ptr.vmem [resolvable:$true] %s189
          %195 = dma.hbm_to_vmem [thread:$0]  %s188, 6144, %s190, %s176, 4096, 2048, 128
        $region28: #{tpu_custom_call.1} parent=23 // pred_fallthru
          _
      $region24: #{tpu_custom_call.1} parent=5 // pred_fallthru
        _
      %p196 = scmp.le.s32.totalorder 1, %s15
      %p197 = scmp.lt.s32.totalorder %s15, 3
      %p198 = pnand %p196, %p197
      %p199 = pneg %p198
      // Predicated region
      $region29: #{tpu_custom_call.1} parent=5 // pred_check
        _
      $region30: #{tpu_custom_call.1} parent=5 // pred_check_branch
        %201 = sbr.rel (%p198) target = $region32
      $region31: #{tpu_custom_call.1} parent=5 // pred_region
        %s202 = ssub.s32 %s15, 1
        %s203 = sand.u32 %s42, 1
        %s204 = scalar_lea.sflag [#allocation3], %s203
        %s205 = sand.u32 %s42, 1
        %s206 = smul.addr %s205, 384
        %s207 = scalar_lea.vmem [#allocation2], %s206
        // Predicated region
        $region33: #{tpu_custom_call.1} parent=31 // pred_check
          %p208 = pneg %p55
        $region34: #{tpu_custom_call.1} parent=31 // pred_check_branch
          %210 = sbr.rel (%p208) target = $region36
        $region35: #{tpu_custom_call.1} parent=31 // pred_region
          %211 = dma.done %s204, 6144
        $region36: #{tpu_custom_call.1} parent=31 // pred_fallthru
          _
        %s212 = sand.u32 %s42, 1
        %s213 = scalar_lea.sflag [#allocation3], %s212
        %s214 = sand.u32 %s42, 1
        %s215 = smul.addr %s214, 384
        %s216 = scalar_lea.vmem [#allocation2], %s215
        %p217 = pneg %p55
        %p218 = pneg %p52
        %s219 = smul.u32 3, %s24
        %p220 = scmp.lt.s32.totalorder %s219, 2
        %s221 = scalar_select %p220, %s219, 2
        %s222 = smul.addr %s221, 8
        %s223 = scalar_lea.vmem %s1, %s222
        %p224 = pneg %p81
        %p225 = pneg %p78
        %s226 = smul.u32 3, %s24
        %p227 = scmp.lt.s32.totalorder %s226, 2
        %s228 = scalar_select %p227, %s226, 2
        %s229 = smul.addr %s228, 8
        %s230 = scalar_lea.vmem %s2, %s229
        %p231 = pneg %p107
        %p232 = pneg %p104
        %p233 = pneg %p135
        %p234 = pneg %p132
        %s235 = sand.u32 %s122, 1
        %s236 = scalar_lea.sflag [#allocation4], %s235
        %s237 = sand.u32 %s122, 1
        %s238 = smul.addr %s237, 384
        %s239 = scalar_lea.vmem [#allocation5], %s238
        %s240 = smul.u32 3, %s24
        %s241 = smul.u32 16, %s25
        %s242 = smul.u32 3, %s24
        %p243 = scmp.lt.s32.totalorder %s242, 2
        %s244 = scalar_select %p243, %s242, 2
        %s245 = smul.addr %s244, 8
        %s246 = scalar_lea.vmem %s1, %s245
        %s247 = smul.u32 3, %s24
        %s248 = smul.u32 3, %s24
        %p249 = scmp.lt.s32.totalorder %s248, 2
        %s250 = scalar_select %p249, %s248, 2
        %s251 = smul.addr %s250, 8
        %s252 = scalar_lea.vmem %s2, %s251
        %s253 = smul.u32 3, %s24
        %s254 = smul.u32 3, %s24
        %s255 = smul.u32 16, %s25
        %v256 = vld [vmem:[%s207] sm:$0xff]
        %v257 = vld [vmem:[%s207 + $0x8] sm:$0xff]
        %v258 = vld [vmem:[%s207 + $0x10] sm:$0xff]
        %v259 = vld [vmem:[%s207 + $0x18] sm:$0xff]
        %v260 = vld [vmem:[%s207 + $0x20] sm:$0xff]
        %v261 = vld [vmem:[%s207 + $0x28] sm:$0xff]
        %v262 = vld [vmem:[%s207 + $0x30] sm:$0xff]
        %v263 = vld [vmem:[%s207 + $0x38] sm:$0xff]
        %v264 = vld [vmem:[%s207 + $0x40] sm:$0xff]
        %v265 = vld [vmem:[%s207 + $0x48] sm:$0xff]
        %v266 = vld [vmem:[%s207 + $0x50] sm:$0xff]
        %v267 = vld [vmem:[%s207 + $0x58] sm:$0xff]
        %v268 = vld [vmem:[%s207 + $0x60] sm:$0xff]
        %v269 = vld [vmem:[%s207 + $0x68] sm:$0xff]
        %v270 = vld [vmem:[%s207 + $0x70] sm:$0xff]
        %v271 = vld [vmem:[%s207 + $0x78] sm:$0xff]
        %v272 = vld [vmem:[%s207 + $0x80] sm:$0xff]
        %v273 = vld [vmem:[%s207 + $0x88] sm:$0xff]
        %v274 = vld [vmem:[%s207 + $0x90] sm:$0xff]
        %v275 = vld [vmem:[%s207 + $0x98] sm:$0xff]
        %v276 = vld [vmem:[%s207 + $0xa0] sm:$0xff]
        %v277 = vld [vmem:[%s207 + $0xa8] sm:$0xff]
        %v278 = vld [vmem:[%s207 + $0xb0] sm:$0xff]
        %v279 = vld [vmem:[%s207 + $0xb8] sm:$0xff]
        %v280 = vld [vmem:[%s207 + $0xc0] sm:$0xff]
        %v281 = vld [vmem:[%s207 + $0xc8] sm:$0xff]
        %v282 = vld [vmem:[%s207 + $0xd0] sm:$0xff]
        %v283 = vld [vmem:[%s207 + $0xd8] sm:$0xff]
        %v284 = vld [vmem:[%s207 + $0xe0] sm:$0xff]
        %v285 = vld [vmem:[%s207 + $0xe8] sm:$0xff]
        %v286 = vld [vmem:[%s207 + $0xf0] sm:$0xff]
        %v287 = vld [vmem:[%s207 + $0xf8] sm:$0xff]
        %v288 = vld [vmem:[%s207 + $0x100] sm:$0xff]
        %v289 = vld [vmem:[%s207 + $0x108] sm:$0xff]
        %v290 = vld [vmem:[%s207 + $0x110] sm:$0xff]
        %v291 = vld [vmem:[%s207 + $0x118] sm:$0xff]
        %v292 = vld [vmem:[%s207 + $0x120] sm:$0xff]
        %v293 = vld [vmem:[%s207 + $0x128] sm:$0xff]
        %v294 = vld [vmem:[%s207 + $0x130] sm:$0xff]
        %v295 = vld [vmem:[%s207 + $0x138] sm:$0xff]
        %v296 = vld [vmem:[%s207 + $0x140] sm:$0xff]
        %v297 = vld [vmem:[%s207 + $0x148] sm:$0xff]
        %v298 = vld [vmem:[%s207 + $0x150] sm:$0xff]
        %v299 = vld [vmem:[%s207 + $0x158] sm:$0xff]
        %v300 = vld [vmem:[%s207 + $0x160] sm:$0xff]
        %v301 = vld [vmem:[%s207 + $0x168] sm:$0xff]
        %v302 = vld [vmem:[%s207 + $0x170] sm:$0xff]
        %v303 = vld [vmem:[%s207 + $0x178] sm:$0xff]
        %v304 = vld [vmem:[%s246] sm:$0xff]
        %v305 = vld [vmem:[%s246 + $0x8] sm:$0xff]
        %v306 = vld [vmem:[%s246 + $0x10] sm:$0xff]
        %308 = vset.pattern.permute.xlu0 0
        %309 = vperm.xlu0 %308, %v304
        %v310 = vpop.permute.xlu0 %309
        %313 = vset.pattern.permute.xlu0 0
        %314 = vperm.xlu0 %313, %v305
        %v315 = vpop.permute.xlu0 %314
        %318 = vset.pattern.permute.xlu0 0
        %319 = vperm.xlu0 %318, %v306
        %v320 = vpop.permute.xlu0 %319
        %v322 = vmul.f32 %v256, %v310
        %v323 = vmul.f32 %v257, %v310
        %v324 = vmul.f32 %v258, %v310
        %v325 = vmul.f32 %v259, %v310
        %v326 = vmul.f32 %v260, %v310
        %v327 = vmul.f32 %v261, %v310
        %v328 = vmul.f32 %v262, %v310
        %v329 = vmul.f32 %v263, %v310
        %v330 = vmul.f32 %v264, %v310
        %v331 = vmul.f32 %v265, %v310
        %v332 = vmul.f32 %v266, %v310
        %v333 = vmul.f32 %v267, %v310
        %v334 = vmul.f32 %v268, %v310
        %v335 = vmul.f32 %v269, %v310
        %v336 = vmul.f32 %v270, %v310
        %v337 = vmul.f32 %v271, %v310
        %v338 = vmul.f32 %v272, %v315
        %v339 = vmul.f32 %v273, %v315
        %v340 = vmul.f32 %v274, %v315
        %v341 = vmul.f32 %v275, %v315
        %v342 = vmul.f32 %v276, %v315
        %v343 = vmul.f32 %v277, %v315
        %v344 = vmul.f32 %v278, %v315
        %v345 = vmul.f32 %v279, %v315
        %v346 = vmul.f32 %v280, %v315
        %v347 = vmul.f32 %v281, %v315
        %v348 = vmul.f32 %v282, %v315
        %v349 = vmul.f32 %v283, %v315
        %v350 = vmul.f32 %v284, %v315
        %v351 = vmul.f32 %v285, %v315
        %v352 = vmul.f32 %v286, %v315
        %v353 = vmul.f32 %v287, %v315
        %v354 = vmul.f32 %v288, %v320
        %v355 = vmul.f32 %v289, %v320
        %v356 = vmul.f32 %v290, %v320
        %v357 = vmul.f32 %v291, %v320
        %v358 = vmul.f32 %v292, %v320
        %v359 = vmul.f32 %v293, %v320
        %v360 = vmul.f32 %v294, %v320
        %v361 = vmul.f32 %v295, %v320
        %v362 = vmul.f32 %v296, %v320
        %v363 = vmul.f32 %v297, %v320
        %v364 = vmul.f32 %v298, %v320
        %v365 = vmul.f32 %v299, %v320
        %v366 = vmul.f32 %v300, %v320
        %v367 = vmul.f32 %v301, %v320
        %v368 = vmul.f32 %v302, %v320
        %v369 = vmul.f32 %v303, %v320
        %v370 = vld [vmem:[%s252] sm:$0xff]
        %v371 = vld [vmem:[%s252 + $0x8] sm:$0xff]
        %v372 = vld [vmem:[%s252 + $0x10] sm:$0xff]
        %374 = vset.pattern.permute.xlu0 0
        %375 = vperm.xlu0 %374, %v370
        %v376 = vpop.permute.xlu0 %375
        %379 = vset.pattern.permute.xlu0 0
        %380 = vperm.xlu0 %379, %v371
        %v381 = vpop.permute.xlu0 %380
        %384 = vset.pattern.permute.xlu0 0
        %385 = vperm.xlu0 %384, %v372
        %v386 = vpop.permute.xlu0 %385
        %v388 = vadd.f32 %v322, %v376
        %v389 = vadd.f32 %v323, %v376
        %v390 = vadd.f32 %v324, %v376
        %v391 = vadd.f32 %v325, %v376
        %v392 = vadd.f32 %v326, %v376
        %v393 = vadd.f32 %v327, %v376
        %v394 = vadd.f32 %v328, %v376
        %v395 = vadd.f32 %v329, %v376
        %v396 = vadd.f32 %v330, %v376
        %v397 = vadd.f32 %v331, %v376
        %v398 = vadd.f32 %v332, %v376
        %v399 = vadd.f32 %v333, %v376
        %v400 = vadd.f32 %v334, %v376
        %v401 = vadd.f32 %v335, %v376
        %v402 = vadd.f32 %v336, %v376
        %v403 = vadd.f32 %v337, %v376
        %v404 = vadd.f32 %v338, %v381
        %v405 = vadd.f32 %v339, %v381
        %v406 = vadd.f32 %v340, %v381
        %v407 = vadd.f32 %v341, %v381
        %v408 = vadd.f32 %v342, %v381
        %v409 = vadd.f32 %v343, %v381
        %v410 = vadd.f32 %v344, %v381
        %v411 = vadd.f32 %v345, %v381
        %v412 = vadd.f32 %v346, %v381
        %v413 = vadd.f32 %v347, %v381
        %v414 = vadd.f32 %v348, %v381
        %v415 = vadd.f32 %v349, %v381
        %v416 = vadd.f32 %v350, %v381
        %v417 = vadd.f32 %v351, %v381
        %v418 = vadd.f32 %v352, %v381
        %v419 = vadd.f32 %v353, %v381
        %v420 = vadd.f32 %v354, %v386
        %v421 = vadd.f32 %v355, %v386
        %v422 = vadd.f32 %v356, %v386
        %v423 = vadd.f32 %v357, %v386
        %v424 = vadd.f32 %v358, %v386
        %v425 = vadd.f32 %v359, %v386
        %v426 = vadd.f32 %v360, %v386
        %v427 = vadd.f32 %v361, %v386
        %v428 = vadd.f32 %v362, %v386
        %v429 = vadd.f32 %v363, %v386
        %v430 = vadd.f32 %v364, %v386
        %v431 = vadd.f32 %v365, %v386
        %v432 = vadd.f32 %v366, %v386
        %v433 = vadd.f32 %v367, %v386
        %v434 = vadd.f32 %v368, %v386
        %v435 = vadd.f32 %v369, %v386
        %436 = vst [vmem:[%s239] sm:$0xff] %v388
        %437 = vst [vmem:[%s239 + $0x8] sm:$0xff] %v389
        %438 = vst [vmem:[%s239 + $0x10] sm:$0xff] %v390
        %439 = vst [vmem:[%s239 + $0x18] sm:$0xff] %v391
        %440 = vst [vmem:[%s239 + $0x20] sm:$0xff] %v392
        %441 = vst [vmem:[%s239 + $0x28] sm:$0xff] %v393
        %442 = vst [vmem:[%s239 + $0x30] sm:$0xff] %v394
        %443 = vst [vmem:[%s239 + $0x38] sm:$0xff] %v395
        %444 = vst [vmem:[%s239 + $0x40] sm:$0xff] %v396
        %445 = vst [vmem:[%s239 + $0x48] sm:$0xff] %v397
        %446 = vst [vmem:[%s239 + $0x50] sm:$0xff] %v398
        %447 = vst [vmem:[%s239 + $0x58] sm:$0xff] %v399
        %448 = vst [vmem:[%s239 + $0x60] sm:$0xff] %v400
        %449 = vst [vmem:[%s239 + $0x68] sm:$0xff] %v401
        %450 = vst [vmem:[%s239 + $0x70] sm:$0xff] %v402
        %451 = vst [vmem:[%s239 + $0x78] sm:$0xff] %v403
        %452 = vst [vmem:[%s239 + $0x80] sm:$0xff] %v404
        %453 = vst [vmem:[%s239 + $0x88] sm:$0xff] %v405
        %454 = vst [vmem:[%s239 + $0x90] sm:$0xff] %v406
        %455 = vst [vmem:[%s239 + $0x98] sm:$0xff] %v407
        %456 = vst [vmem:[%s239 + $0xa0] sm:$0xff] %v408
        %457 = vst [vmem:[%s239 + $0xa8] sm:$0xff] %v409
        %458 = vst [vmem:[%s239 + $0xb0] sm:$0xff] %v410
        %459 = vst [vmem:[%s239 + $0xb8] sm:$0xff] %v411
        %460 = vst [vmem:[%s239 + $0xc0] sm:$0xff] %v412
        %461 = vst [vmem:[%s239 + $0xc8] sm:$0xff] %v413
        %462 = vst [vmem:[%s239 + $0xd0] sm:$0xff] %v414
        %463 = vst [vmem:[%s239 + $0xd8] sm:$0xff] %v415
        %464 = vst [vmem:[%s239 + $0xe0] sm:$0xff] %v416
        %465 = vst [vmem:[%s239 + $0xe8] sm:$0xff] %v417
        %466 = vst [vmem:[%s239 + $0xf0] sm:$0xff] %v418
        %467 = vst [vmem:[%s239 + $0xf8] sm:$0xff] %v419
        %468 = vst [vmem:[%s239 + $0x100] sm:$0xff] %v420
        %469 = vst [vmem:[%s239 + $0x108] sm:$0xff] %v421
        %470 = vst [vmem:[%s239 + $0x110] sm:$0xff] %v422
        %471 = vst [vmem:[%s239 + $0x118] sm:$0xff] %v423
        %472 = vst [vmem:[%s239 + $0x120] sm:$0xff] %v424
        %473 = vst [vmem:[%s239 + $0x128] sm:$0xff] %v425
        %474 = vst [vmem:[%s239 + $0x130] sm:$0xff] %v426
        %475 = vst [vmem:[%s239 + $0x138] sm:$0xff] %v427
        %476 = vst [vmem:[%s239 + $0x140] sm:$0xff] %v428
        %477 = vst [vmem:[%s239 + $0x148] sm:$0xff] %v429
        %478 = vst [vmem:[%s239 + $0x150] sm:$0xff] %v430
        %479 = vst [vmem:[%s239 + $0x158] sm:$0xff] %v431
        %480 = vst [vmem:[%s239 + $0x160] sm:$0xff] %v432
        %481 = vst [vmem:[%s239 + $0x168] sm:$0xff] %v433
        %482 = vst [vmem:[%s239 + $0x170] sm:$0xff] %v434
        %483 = vst [vmem:[%s239 + $0x178] sm:$0xff] %v435
        %s484 = sand.u32 %s122, 1
        %s485 = scalar_lea.sflag [#allocation4], %s484
        %s486 = sand.u32 %s122, 1
        %s487 = smul.addr %s486, 384
        %s488 = scalar_lea.vmem [#allocation5], %s487
        // Predicated region
        $region37: #{tpu_custom_call.1} parent=31 // pred_check
          %p489 = pneg %p132
        $region38: #{tpu_custom_call.1} parent=31 // pred_check_branch
          %491 = sbr.rel (%p489) target = $region40
        $region39: #{tpu_custom_call.1} parent=31 // pred_region
          %s492 = smul.u32 3, %s24
          %s493 = smul.u32 16, %s25
          %s495 = ssub.s32 6144, 6144
          %496 = vsyncadd %s485, %s495
          %s497 = smul.addr %s492, 32
          %s498 = sadd.s32 %s493, %s497
          %s499 = smul.addr %s498, 128
          %s500 = scalar_lea.hbm %s3, %s499
          %s501 = sshll.u32 %s488, 4
          %s502 = int_to_ptr.vmem [resolvable:$true] %s501
          %507 = dma.vmem_to_hbm [thread:$0]  %s502, 6144, %s500, %s485, 2048, 4096, 128
        $region40: #{tpu_custom_call.1} parent=31 // pred_fallthru
          _
      $region32: #{tpu_custom_call.1} parent=5 // pred_fallthru
        _
      %p508 = scmp.le.s32.totalorder 2, %s15
      // Predicated region
      $region41: #{tpu_custom_call.1} parent=5 // pred_check
        %p509 = pneg %p508
      $region42: #{tpu_custom_call.1} parent=5 // pred_check_branch
        %511 = sbr.rel (%p509) target = $region44
      $region43: #{tpu_custom_call.1} parent=5 // pred_region
        %s512 = ssub.s32 %s15, 2
        // Predicated region
        $region45: #{tpu_custom_call.1} parent=43 // pred_check
          %p513 = pneg %p138
        $region46: #{tpu_custom_call.1} parent=43 // pred_check_branch
          %515 = sbr.rel (%p513) target = $region48
        $region47: #{tpu_custom_call.1} parent=43 // pred_region
          %s516 = sand.u32 %s123, 1
          %s517 = scalar_lea.sflag [#allocation4], %s516
          %s518 = sand.u32 %s123, 1
          %s519 = smul.addr %s518, 384
          %s520 = scalar_lea.vmem [#allocation5], %s519
          %521 = dma.done %s517, 6144
        $region48: #{tpu_custom_call.1} parent=43 // pred_fallthru
          _
      $region44: #{tpu_custom_call.1} parent=5 // pred_fallthru
        _
    $region6: #{tpu_custom_call.1} parent=1 // loop_footer
      %s19 = sadd.s32 1, %s15
    $region7: #{tpu_custom_call.1} parent=1 // loop_footer_branch
      %14 = sbr.rel target = $region3
    $region8: #{tpu_custom_call.1} parent=1 // loop_exit
      _
    %522 = vsyncpa [#allocation3], 1
    %s523 = scalar_lea.sflag [#allocation3], 1
    %524 = vsyncpa %s523, 1
    %525 = vsyncpa [#allocation4], 1
    %s526 = scalar_lea.sflag [#allocation4], 1
    %527 = vsyncpa %s526, 1

</llo_original>
